<compile_context>
chip_gen: v6e
topology: v6e:2x2x1
jax: 0.10.0
libtpu: 0.0.40
codegen_flags: <defaults>
</compile_context>

<pallas_src>
import functools

import numpy as np
import jax
import jax.numpy as jnp
from jax import lax
from jax.experimental import pallas as pl
from jax.experimental.pallas import tpu as pltpu

EPS = 1e-07


def _cdiv(a, b):
    return -(-a // b)


def _round_up(a, b):
    return _cdiv(a, b) * b


def _vmem_budget():
    """(per-input-block byte budget, vmem_limit_bytes), tuned per TPU generation."""
    try:
        vmem_bytes = pltpu.get_tpu_info().vmem_capacity_bytes
    except Exception:
        vmem_bytes = 64 * 1024 * 1024                  # assume smallest (v7x-like) VMEM
    if vmem_bytes >= 128 * 1024 * 1024:                # v5e / v6e: 128 MiB physical
        return 12 * 1024 * 1024, 56 * 1024 * 1024
    return 9 * 1024 * 1024, 40 * 1024 * 1024           # v7x: 64 MiB physical


def _choose_tiles(n_rows, k2, itemsize, block_bytes):
    """Pick (tm, nc, nj): row-tile size, parallel slices, sequential tiles per slice.

    Guarantees nc * nj == cdiv(n_rows, tm) (every block index is in range) and an
    even tile count (nc == 2) whenever more than one tile exists, so both v7x
    TensorCores are always used.  Tile size is capped purely by bytes.
    """
    align = max(8, 32 // itemsize)                     # 8 rows f32, 16 bf16, 32 int8/fp8
    lane_bytes = _round_up(k2, 128) * itemsize         # padded VMEM bytes per row
    tm_cap = max(align, (block_bytes // lane_bytes) // align * align)

    if n_rows <= tm_cap:
        if n_rows > align:
            tm = _round_up(_cdiv(n_rows, 2), align)    # two balanced tiles -> one per v7x TC
            if _cdiv(n_rows, tm) == 2:
                return tm, 2, 1
        return n_rows, 1, 1                            # tiny input: one full-extent tile

    tm = tm_cap
    while tm >= align:                                 # largest aligned tm with an even tile count
        n_tiles = _cdiv(n_rows, tm)
        if n_tiles % 2 == 0:
            tm_bal = _round_up(_cdiv(n_rows, n_tiles), align)
            if _cdiv(n_rows, tm_bal) == n_tiles:       # rebalance the last tile if possible
                tm = tm_bal
            return tm, 2, n_tiles // 2
        tm -= align
    return tm_cap, 1, _cdiv(n_rows, tm_cap)            # unreachable in practice


def _fast_recip(d):
    """Approx EUP reciprocal + one Newton-Raphson step (~1e-7 relative error)."""
    r = pl.reciprocal(d, approx=True)
    return r * (2.0 - d * r)


def _nce_kernel(*refs, c, n_rows, nj, folded):
    if folded:
        mask_ref, x_ref, o_ref = refs                  # mask: (1, k2) int32, 1 at original col 0
    else:
        x_ref, o_ref = refs

    i = pl.program_id(0)                               # parallel partial-sum index (v7x megacore)
    j = pl.program_id(1)                               # sequential tile index within this partial

    @pl.when(j == 0)
    def _init():
        o_ref[...] = jnp.zeros_like(o_ref)

    tm = x_ref.shape[0]
    row0 = (i * nj + j) * tm                           # first (folded) row of this tile
    c_eps = c + EPS

    x = x_ref[...].astype(jnp.float32)                 # (tm, k2)
    r = _fast_recip(x + c_eps)                         # 1 / (x + c + eps), EUP + 1 NR step

    if folded:
        # Lane-dense folded layout: original column-0 entries marked by the constant mask.
        pos = mask_ref[...] > 0                        # (1, k2) bool, broadcast over rows
        term = jnp.where(pos, jnp.log(x * r), c * r)
        per_row = jnp.sum(term, axis=1, keepdims=True)
    else:
        # Realistic path (K >= 128): log / positive term restricted to column 0,
        # negatives reuse the reciprocal.
        x0 = x[:, 0:1]
        r0 = r[:, 0:1]
        per_row = jnp.log(x0 * r0) + c * (jnp.sum(r, axis=1, keepdims=True) - r0)

    # Padded / stale rows of a partial last tile are masked with a true SELECT,
    # so NaN/Inf produced there never reaches the accumulator.
    row_id = row0 + lax.broadcasted_iota(jnp.int32, (tm, 1), 0)
    valid = row_id < n_rows
    o_ref[...] += jnp.sum(jnp.where(valid, per_row, 0.0))


def nce_criterion(x, n_data):
    """Pallas implementation of NCECriterion(n_data)(x). Returns shape (1,) float32."""
    bsz, k = x.shape
    m = k - 1
    c = float(m) / float(n_data)

    # Fold rows into lanes when K is lane-sparse (<128). Pure row-major reshape: no copy.
    fold = 1
    if k < 128:
        for f in (128, 64, 32, 16, 8, 4, 2):
            if bsz % f == 0:
                fold = f
                break
    n_rows = bsz // fold
    k2 = k * fold
    x2 = x.reshape(n_rows, k2)

    block_bytes, vmem_limit = _vmem_budget()
    tm, nc, nj = _choose_tiles(n_rows, k2, x.dtype.itemsize, block_bytes)

    folded = fold > 1
    kernel = functools.partial(_nce_kernel, c=c, n_rows=n_rows, nj=nj, folded=folded)

    args = []
    in_specs = []
    if folded:
        pos_mask = (np.arange(k2, dtype=np.int64) % k == 0).astype(np.int32).reshape(1, k2)
        args.append(jnp.asarray(pos_mask))
        in_specs.append(pl.BlockSpec((1, k2), lambda i, j: (0, 0)))     # constant block, no re-fetch
    args.append(x2)
    in_specs.append(pl.BlockSpec((tm, k2), lambda i, j: (i * nj + j, 0)))

    out = pl.pallas_call(
        kernel,
        out_shape=jax.ShapeDtypeStruct((8, 128 * nc), jnp.float32),
        grid=(nc, nj),
        in_specs=in_specs,
        out_specs=pl.BlockSpec((8, 128), lambda i, j: (0, i)),
        compiler_params=pltpu.CompilerParams(
            dimension_semantics=("parallel", "arbitrary"),
            vmem_limit_bytes=vmem_limit,
        ),
    )(*args)

    partials = out[0, ::128]                           # one accumulated total per parallel slice
    return (-jnp.sum(partials) / jnp.float32(bsz)).reshape(1)


def nce_criterion_ref(x, n_data):
    """Pure-JAX reference mirroring the PyTorch module line-by-line."""
    bsz = x.shape[0]
    m = x.shape[1] - 1
    Pn = 1.0 / float(n_data)
    xf = x.astype(jnp.float32)
    P_pos = xf[:, 0]
    log_D1 = jnp.log(P_pos / (P_pos + m * Pn + EPS))
    P_neg = xf[:, 1:]
    log_D0 = (m * Pn) / (P_neg + m * Pn + EPS)
    return (-(jnp.sum(log_D1) + jnp.sum(log_D0)) / bsz).reshape(1)


if __name__ == "__main__":
    key = jax.random.PRNGKey(0)
    cases = [
        (8, 9, 1024, jnp.float32),        # tiny demo: folded path, single degenerate tile
        (256, 9, 4096, jnp.float32),      # fold=128 -> fully lane-dense folded layout
        (7000, 129, 16384, jnp.float32),  # column-0 path, grid (2,1): both-TC partials,
                                          # masked partial last tile
        (512, 4097, 16384, jnp.bfloat16), # realistic NCE width, bf16 streaming, 16-row alignment
    ]
    for idx, (bsz, K, n_data, dtype) in enumerate(cases):
        kk = jax.random.fold_in(key, idx)
        x = jax.random.uniform(kk, (bsz, K), dtype=jnp.float32,
                               minval=1e-4, maxval=1.0).astype(dtype)
        loss = jax.block_until_ready(nce_criterion(x, n_data))
        ref = jax.block_until_ready(nce_criterion_ref(x, n_data))
        assert loss.shape == (1,), loss.shape
        assert jnp.allclose(loss, ref, rtol=1e-4, atol=1e-5), (bsz, K, loss, ref)
    print("KERNEL_OK")
</pallas_src>

<mosaic_0001>
module attributes {stable_mosaic.version = 11 : i64} {
  func.func @_nce_kernel(%arg0: i32, %arg1: i32, %arg2: memref<1x72xi32, #tpu.memory_space<vmem>>, %arg3: memref<1x72xf32, #tpu.memory_space<vmem>>, %arg4: memref<8x128xf32, #tpu.memory_space<vmem>>) attributes {dimension_semantics = [#tpu.dimension_semantics<parallel>, #tpu.dimension_semantics<arbitrary>], iteration_bounds = array<i64: 1, 1>, scalar_prefetch = 0 : i64, scratch_operands = 0 : i64, tpu.core_type = #tpu.core_type<tc>, window_params = [{pipeline_mode = #tpu.pipeline_mode<synchronous>, transform_indices = @transform_0, window_bounds = array<i64: 1, 72>}, {transform_indices = @transform_1, window_bounds = array<i64: 1, 72>}, {transform_indices = @transform_2, window_bounds = array<i64: 8, 128>}]} {
    %c0_i32 = arith.constant 0 : i32
    %0 = arith.cmpi eq, %arg1, %c0_i32 : i32
    %1 = arith.extui %0 : i1 to i32
    %c0_i32_0 = arith.constant 0 : i32
    %2 = arith.cmpi ne, %1, %c0_i32_0 : i32
    scf.if %2 {
      %cst_16 = arith.constant 0.000000e+00 : f32
      %39 = vector.broadcast %cst_16 : f32 to vector<8x128xf32>
      %c0_17 = arith.constant 0 : index
      %c0_18 = arith.constant 0 : index
      %40 = vector.load %arg4[%c0_17, %c0_18] : memref<8x128xf32, #tpu.memory_space<vmem>>, vector<8x128xf32>
      tpu.vector_store %arg4[%c0_17, %c0_18], %39 {strides = array<i32>} : memref<8x128xf32, #tpu.memory_space<vmem>>, vector<8x128xf32>,
    } else {
    }
    %c1_i32 = arith.constant 1 : i32
    %3 = arith.muli %arg0, %c1_i32 : i32
    %4 = arith.addi %3, %arg1 : i32
    %c1_i32_1 = arith.constant 1 : i32
    %5 = arith.muli %4, %c1_i32_1 : i32
    %c0 = arith.constant 0 : index
    %c0_2 = arith.constant 0 : index
    %6 = vector.load %arg3[%c0, %c0_2] : memref<1x72xf32, #tpu.memory_space<vmem>>, vector<1x72xf32>
    %cst = arith.constant 7.812600e-03 : f32
    %7 = vector.broadcast %cst : f32 to vector<1x72xf32>
    %8 = arith.addf %6, %7 : vector<1x72xf32>
    %9 = tpu.reciprocal %8 {approx = true} : vector<1x72xf32> -> vector<1x72xf32>
    %10 = arith.mulf %8, %9 : vector<1x72xf32>
    %cst_3 = arith.constant 2.000000e+00 : f32
    %11 = vector.broadcast %cst_3 : f32 to vector<1x72xf32>
    %12 = arith.subf %11, %10 : vector<1x72xf32>
    %13 = arith.mulf %9, %12 : vector<1x72xf32>
    %c0_4 = arith.constant 0 : index
    %c0_5 = arith.constant 0 : index
    %14 = vector.load %arg2[%c0_4, %c0_5] : memref<1x72xi32, #tpu.memory_space<vmem>>, vector<1x72xi32>
    %c0_i32_6 = arith.constant 0 : i32
    %15 = vector.broadcast %c0_i32_6 : i32 to vector<1x72xi32>
    %16 = arith.cmpi sgt, %14, %15 : vector<1x72xi32>
    %17 = arith.mulf %6, %13 : vector<1x72xf32>
    %18 = math.log %17 : vector<1x72xf32>
    %cst_7 = arith.constant 7.812500e-03 : f32
    %19 = vector.broadcast %cst_7 : f32 to vector<1x72xf32>
    %20 = arith.mulf %19, %13 : vector<1x72xf32>
    %21 = arith.select %16, %18, %20 : vector<1x72xi1>, vector<1x72xf32>
    %cst_8 = arith.constant dense<0.000000e+00> : vector<1xf32>
    %22 = vector.multi_reduction <add>, %21, %cst_8 [1] : vector<1x72xf32> to vector<1xf32>
    %23 = vector.shape_cast %22 : vector<1xf32> to vector<1x1xf32>
    %24 = tpu.iota {dimensions = array<i32: 0>} : vector<1x1xi32>
    %25 = vector.broadcast %5 : i32 to vector<1x1xi32>
    %26 = arith.addi %25, %24 : vector<1x1xi32>
    %c1_i32_9 = arith.constant 1 : i32
    %27 = vector.broadcast %c1_i32_9 : i32 to vector<1x1xi32>
    %28 = arith.cmpi slt, %26, %27 : vector<1x1xi32>
    %c0_10 = arith.constant 0 : index
    %c0_11 = arith.constant 0 : index
    %29 = vector.load %arg4[%c0_10, %c0_11] : memref<8x128xf32, #tpu.memory_space<vmem>>, vector<8x128xf32>
    %cst_12 = arith.constant 0.000000e+00 : f32
    %30 = vector.broadcast %cst_12 : f32 to vector<1x1xf32>
    %31 = arith.select %28, %23, %30 : vector<1x1xi1>, vector<1x1xf32>
    %32 = vector.shape_cast %31 : vector<1x1xf32> to vector<1x1x1xf32>
    %cst_13 = arith.constant dense<0.000000e+00> : vector<1xf32>
    %33 = vector.multi_reduction <add>, %32, %cst_13 [1, 2] : vector<1x1x1xf32> to vector<1xf32>
    %34 = vector.shape_cast %33 : vector<1xf32> to vector<1x1x1xf32>
    %35 = vector.extract %34[0, 0, 0] : f32 from vector<1x1x1xf32>
    %36 = vector.broadcast %35 : f32 to vector<8x128xf32>
    %37 = arith.addf %29, %36 : vector<8x128xf32>
    %c0_14 = arith.constant 0 : index
    %c0_15 = arith.constant 0 : index
    %38 = vector.load %arg4[%c0_14, %c0_15] : memref<8x128xf32, #tpu.memory_space<vmem>>, vector<8x128xf32>
    tpu.vector_store %arg4[%c0_14, %c0_15], %37 {strides = array<i32>} : memref<8x128xf32, #tpu.memory_space<vmem>>, vector<8x128xf32>,
    return
  }
  func.func @transform_0(%arg0: i32, %arg1: i32) -> (i32, i32) {
    %c0_i32 = arith.constant 0 : i32
    %c0_i32_0 = arith.constant 0 : i32
    %c0_i32_1 = arith.constant 0 : i32
    return %c0_i32, %c0_i32_0 : i32, i32
  }
  func.func @transform_1(%arg0: i32, %arg1: i32) -> (i32, i32) {
    %c1_i32 = arith.constant 1 : i32
    %0 = arith.muli %arg0, %c1_i32 : i32
    %1 = arith.addi %0, %arg1 : i32
    %c0_i32 = arith.constant 0 : i32
    %c0_i32_0 = arith.constant 0 : i32
    return %1, %c0_i32 : i32, i32
  }
  func.func @transform_2(%arg0: i32, %arg1: i32) -> (i32, i32) {
    %c0_i32 = arith.constant 0 : i32
    %c0_i32_0 = arith.constant 0 : i32
    return %c0_i32, %arg0 : i32, i32
  }
}

</mosaic_0001>

<llo_original>
// kernel: tpu_custom_call.1
$region0: #{tpu_custom_call.1}
  #allocation0 [shape = 'u32[]', space=smem, size = 0x4, offset = 0x4, fixed_abs, tag = 'smem constant byte address 0x4 - core index']
  #allocation1 [shape = 'u32[144,128]{1,0:T(1,128)}', space=vmem, size = 0x12000, scoped, tag = 'internal scratch']
  %s0 = inlined_call_operand.hbm [shape: s32[1,72], index: 0, kind: input, shape index: {}]
  %s1 = inlined_call_operand.vmem [shape: f32[1,72], index: 1, kind: input, shape index: {}]
  %s2 = inlined_call_operand.hbm [shape: f32[8,128], index: 2, kind: output, shape index: {}]
  %s3 = sld [smem:[#allocation0]]
  $region26: #{tpu_custom_call.1} parent=0
    _
  %s5 = ssub.s32 1, %s3
  %s6 = scalar_select 0, %s5, %s3
  $region1: #{tpu_custom_call.1} parent=0
    #allocation2 [shape = 'u8[512]{0}', space=vmem, size = 0x400, scoped, tag = 'input window, operand 0, single buffered']
    #allocation3 [shape = 's32[1]{0}', space=sflag, size = 0x4, scoped, tag = 'scoped memory for tpu_custom_call.1']
    #allocation4 [shape = 's32[1]{0}', space=sflag, size = 0x4, scoped, tag = 'scoped memory for tpu_custom_call.1']
    #allocation5 [shape = 'u8[4096]{0}', space=vmem, size = 0x1000, scoped, tag = 'output window, operand 0, single buffered']
    %7 = vsyncpa [#allocation3], 0
    %8 = vsyncpa [#allocation4], 0
    // Predicated region
    $region2: #{tpu_custom_call.1} parent=1 // pred_check
      _
    $region3: #{tpu_custom_call.1} parent=1 // pred_check_branch
      %10 = sbr.rel (0) target = $region5
    $region4: #{tpu_custom_call.1} parent=1 // pred_region
      %s12 = ssub.s32 16, 16
      %13 = vsyncadd [#allocation3], %s12
      %s15 = sshll.u32 [#allocation2], 4
      %s16 = int_to_ptr.vmem [resolvable:$true] %s15
      %18 = dma.hbm_to_vmem [thread:$0]  %s0, 16, %s16, [#allocation3]
    $region5: #{tpu_custom_call.1} parent=1 // pred_fallthru
      _
    // Predicated region
    $region6: #{tpu_custom_call.1} parent=1 // pred_check
      _
    $region7: #{tpu_custom_call.1} parent=1 // pred_check_branch
      %20 = sbr.rel (0) target = $region9
    $region8: #{tpu_custom_call.1} parent=1 // pred_region
      %s21 = sadd.s32 0, 0
      %p22 = scmp.lt.s32.totalorder %s21, 0
      %s23 = scalar_select %p22, %s21, 0
      %s24 = scalar_lea.vmem %s1, %s23
      %s25 = sadd.s32 0, 0
    $region9: #{tpu_custom_call.1} parent=1 // pred_fallthru
      _
    // Predicated region
    $region10: #{tpu_custom_call.1} parent=1 // pred_check
      _
    $region11: #{tpu_custom_call.1} parent=1 // pred_check_branch
      %27 = sbr.rel (0) target = $region13
    $region12: #{tpu_custom_call.1} parent=1 // pred_region
      %28 = dma.done [#allocation3], 16
    $region13: #{tpu_custom_call.1} parent=1 // pred_fallthru
      _
    %s29 = sadd.s32 0, 0
    %p30 = scmp.lt.s32.totalorder %s29, 0
    %s31 = scalar_select %p30, %s29, 0
    %s32 = scalar_lea.vmem %s1, %s31
    %s33 = sadd.s32 0, 0
    %p34 = scmp.lt.s32.totalorder %s33, 0
    %s35 = scalar_select %p34, %s33, 0
    %s36 = scalar_lea.vmem %s1, %s35
    %s37 = sadd.s32 0, 0
    %p38 = scmp.eq.s32.totalorder 0, 0
    // Predicated region
    $region14: #{tpu_custom_call.1} parent=1 // pred_check
      %p39 = pneg %p38
    $region15: #{tpu_custom_call.1} parent=1 // pred_check_branch
      %41 = sbr.rel (%p39) target = $region17
    $region16: #{tpu_custom_call.1} parent=1 // pred_region
      %42 = vst [vmem:[#allocation5] sm:$0xff] 0.0
    $region17: #{tpu_custom_call.1} parent=1 // pred_fallthru
      _
    %s43 = sadd.s32 0, 0
    %v44 = vld [vmem:[%s36] sm:$0x1]
    %v45 = vadd.f32 %v44, 0.0078126
    %v46 = vrcp.pop %v45
    %v47 = vmul.f32 %v45, %v46
    %v48 = vsub.f32 2.0, %v47
    %v49 = vmul.f32 %v46, %v48
    %v50 = vld [vmem:[#allocation2] sm:$0x1]
    %vm51 = vcmp.gt.s32.totalorder %v50, 0
    %v52 = vmul.f32 %v44, %v49
    %v53 = vlog2.pop %v52
    %v54 = vmul.f32 %v53, 0.6931472
    %v55 = vmul.f32 %v49, 0.0078125
    %v56 = vsel %vm51, %v54, %v55
    %vm57 = vcmask 581632
    %v58 = vsel %vm57, %v56, 0.0
    %59 = vadd.xlane.f32.xlu0 %v58
    %v60 = vpop.xlane.xlu0 %59
    %v61 = vlaneseq
    %v62 = vshrl.u32 %v61, 7
    %v63 = vstv %s43
    %v64 = vadd.s32 %v63, %v62
    %vm65 = vcmp.lt.s32.totalorder %v64, 1
    %v66 = vld [vmem:[#allocation5] sm:$0xff]
    %v67 = vsel %vm65, %v60, 0.0
    %v68 = vadd.f32 %v67, 0.0
    %s69 = vtos %v68
    %v70 = vstv %s69
    %v71 = vadd.f32 %v66, %v70
    %72 = vst [vmem:[#allocation5] sm:$0xff] %v71
    // Predicated region
    $region18: #{tpu_custom_call.1} parent=1 // pred_check
      _
    $region19: #{tpu_custom_call.1} parent=1 // pred_check_branch
      %74 = sbr.rel (0) target = $region21
    $region20: #{tpu_custom_call.1} parent=1 // pred_region
      %s76 = ssub.s32 128, 128
      %77 = vsyncadd [#allocation4], %s76
      %s79 = sshll.u32 [#allocation5], 4
      %s80 = int_to_ptr.vmem [resolvable:$true] %s79
      %82 = dma.vmem_to_hbm [thread:$0]  %s80, 128, %s2, [#allocation4]
    $region21: #{tpu_custom_call.1} parent=1 // pred_fallthru
      _
    // Predicated region
    $region22: #{tpu_custom_call.1} parent=1 // pred_check
      _
    $region23: #{tpu_custom_call.1} parent=1 // pred_check_branch
      %84 = sbr.rel (0) target = $region25
    $region24: #{tpu_custom_call.1} parent=1 // pred_region
      %85 = dma.done [#allocation4], 128
    $region25: #{tpu_custom_call.1} parent=1 // pred_fallthru
      _
    %86 = vsyncpa [#allocation3], 1
    %87 = vsyncpa [#allocation4], 1

</llo_original>
